<compile_context>
chip_gen: v5e
topology: v5e:2x2
jax: 0.10.0
libtpu: 0.0.40
codegen_flags: <defaults>
</compile_context>

<pallas_src>
import functools

import jax
import jax.numpy as jnp
from jax.experimental import pallas as pl
from jax.experimental.pallas import tpu as pltpu

LANES = 128
# Per-block tile budget (bytes). Input + output are each double-buffered
# (~4x this in VMEM) which we account for via an explicit vmem_limit_bytes.
MAX_TILE_BYTES = 4 * 1024 * 1024


def _sublane_pack(dtype) -> int:
    # Row-tile multiple: 8 sublanes for 4-byte dtypes, 16 for 2-byte, 32 for 1-byte.
    return {4: 8, 2: 16, 1: 32}.get(jnp.dtype(dtype).itemsize, 8)


def _round_up(n: int, m: int) -> int:
    return ((n + m - 1) // m) * m


def _residual_kernel(func, x_ref, o_ref):
    x = x_ref[...]
    # Memory-bound kernel: upcast sub-f32 floats to f32 for the compute; the
    # casts ride otherwise-empty VALU/EUP slots and cost no HBM traffic.
    if jnp.issubdtype(x.dtype, jnp.floating) and jnp.dtype(x.dtype).itemsize < 4:
        x32 = x.astype(jnp.float32)
        o_ref[...] = (x32 + func(x32)).astype(o_ref.dtype)
    else:
        o_ref[...] = x + func(x)


def make_residual(func):
    """Return a callable computing x + func(x) with a fused Pallas TPU kernel.

    `func` must be an element-wise (shape/dtype-preserving) jnp-traceable
    function that captures only Python/numpy scalars (no traced jax.Arrays).
    Note: on partial (masked) tail blocks `func` is evaluated on garbage
    padding lanes and the stores are masked, so `func` must be strictly
    element-wise (no reductions / cross-element lookups).
    """
    # TODO(synk): PyTorch's Residual forwards *args/**kwargs and arbitrary
    # sub-modules to `func`; only capture-free element-wise funcs are fused
    # here. Captured array parameters would need extra pallas_call operands.

    def apply(x):
        orig_shape = x.shape
        dtype = x.dtype
        itemsize = jnp.dtype(dtype).itemsize
        pack = _sublane_pack(dtype)
        total = int(x.size)

        if total == 0:
            return x

        # ---- choose a 2-D slab view (pure reshape, no HBM copies) ----
        if total % LANES == 0:
            cols = LANES                     # lane-dense: unmasked full-lane stores
        else:
            cols = orig_shape[-1] if len(orig_shape) >= 1 else 1
        rows = total // cols
        slab = x.reshape(rows, cols)

        # ---- lane (column) tile ----
        if cols % LANES == 0:
            tc = cols                        # == 128 here
        elif pack * cols * itemsize <= MAX_TILE_BYTES:
            tc = cols                        # full extent (legal for any size)
        else:
            # Huge non-128-divisible last dim: tile lanes in 128-multiples and
            # let Pallas mask the tail block, keeping VMEM bounded.
            tc = max(LANES, (MAX_TILE_BYTES // (pack * itemsize)) // LANES * LANES)

        # ---- row (sublane) tile: purely byte-budgeted ----
        row_bytes = tc * itemsize
        max_tr = max(pack, (MAX_TILE_BYTES // row_bytes) // pack * pack)
        if rows <= pack:
            tr = rows                        # full extent
        else:
            tr = min(max_tr, (rows // pack) * pack)

        # v7x has 2 TensorCores: make sure there are >= 2 grid steps so the
        # "parallel" semantics can actually shard work (harmless elsewhere).
        if pl.cdiv(rows, tr) * pl.cdiv(cols, tc) < 2 and rows >= 2 * pack:
            tr = _round_up((rows + 1) // 2, pack)

        grid = (pl.cdiv(rows, tr), pl.cdiv(cols, tc))

        # Explicit scoped-VMEM limit: in+out, double-buffered, plus headroom.
        tile_bytes = tr * tc * itemsize
        vmem_limit = int(min(48 << 20, max(4 * tile_bytes + (2 << 20), 16 << 20)))

        out = pl.pallas_call(
            functools.partial(_residual_kernel, func),
            out_shape=jax.ShapeDtypeStruct((rows, cols), dtype),
            grid_spec=pltpu.PrefetchScalarGridSpec(
                num_scalar_prefetch=0,
                grid=grid,
                # Default 2-deep pipelining; a Buffered(3) sweep on v7x is a
                # possible 0-5% follow-up once tile sizes are frozen.
                in_specs=[pl.BlockSpec((tr, tc), lambda i, j: (i, j))],
                out_specs=pl.BlockSpec((tr, tc), lambda i, j: (i, j)),
            ),
            compiler_params=pltpu.CompilerParams(
                dimension_semantics=("parallel", "parallel"),
                vmem_limit_bytes=vmem_limit,
            ),
            cost_estimate=pl.CostEstimate(
                flops=10 * total,
                transcendentals=total,
                bytes_accessed=2 * total * itemsize,
            ),
        )(slab)

        return out.reshape(orig_shape)

    return jax.jit(apply)


if __name__ == "__main__":
    # Deterministic example: Residual(func) with func = per-element GELU
    # scaled by a deterministic *Python* constant (stands in for the wrapped
    # module; no traced jax.Array is captured by the kernel).
    key = jax.random.PRNGKey(0)
    x = jax.random.normal(key, (2, 4, 16, 16), dtype=jnp.float32)  # NCHW

    scale = 0.5  # Python float literal -> folded at trace time, not captured

    def inner_func(v):
        return scale * jax.nn.gelu(v)

    # Reference in plain JAX (same math, no kernel), computed up front.
    y_ref = x + inner_func(x)

    residual = make_residual(inner_func)
    y = residual(x)
    jax.block_until_ready(y)

    assert y.shape == x.shape and y.dtype == x.dtype
    assert jnp.allclose(y, y_ref, atol=1e-5, rtol=1e-5)

    print("KERNEL_OK")
</pallas_src>

<mosaic_0001>
module attributes {stable_mosaic.version = 11 : i64} {
  func.func @_residual_kernel(%arg0: i32, %arg1: i32, %arg2: memref<8x128xf32, #tpu.memory_space<vmem>>, %arg3: memref<8x128xf32, #tpu.memory_space<vmem>>) attributes {dimension_semantics = [#tpu.dimension_semantics<parallel>, #tpu.dimension_semantics<parallel>], iteration_bounds = array<i64: 2, 1>, scalar_prefetch = 0 : i64, scratch_operands = 0 : i64, tpu.core_type = #tpu.core_type<tc>, window_params = [{transform_indices = @transform_0, window_bounds = array<i64: 8, 128>}, {transform_indices = @transform_1, window_bounds = array<i64: 8, 128>}]} {
    %c0 = arith.constant 0 : index
    %c0_0 = arith.constant 0 : index
    %0 = vector.load %arg2[%c0, %c0_0] : memref<8x128xf32, #tpu.memory_space<vmem>>, vector<8x128xf32>
    %1 = arith.mulf %0, %0 : vector<8x128xf32>
    %2 = arith.mulf %0, %1 : vector<8x128xf32>
    %cst = arith.constant 4.471500e-02 : f32
    %3 = vector.broadcast %cst : f32 to vector<8x128xf32>
    %4 = arith.mulf %3, %2 : vector<8x128xf32>
    %5 = arith.addf %0, %4 : vector<8x128xf32>
    %cst_1 = arith.constant 0.797884583 : f32
    %6 = vector.broadcast %cst_1 : f32 to vector<8x128xf32>
    %7 = arith.mulf %6, %5 : vector<8x128xf32>
    %8 = math.tanh %7 : vector<8x128xf32>
    %cst_2 = arith.constant 1.000000e+00 : f32
    %9 = vector.broadcast %cst_2 : f32 to vector<8x128xf32>
    %10 = arith.addf %9, %8 : vector<8x128xf32>
    %cst_3 = arith.constant 5.000000e-01 : f32
    %11 = vector.broadcast %cst_3 : f32 to vector<8x128xf32>
    %12 = arith.mulf %11, %10 : vector<8x128xf32>
    %13 = arith.mulf %0, %12 : vector<8x128xf32>
    %cst_4 = arith.constant 5.000000e-01 : f32
    %14 = vector.broadcast %cst_4 : f32 to vector<8x128xf32>
    %15 = arith.mulf %14, %13 : vector<8x128xf32>
    %16 = arith.addf %0, %15 : vector<8x128xf32>
    %c0_5 = arith.constant 0 : index
    %c0_6 = arith.constant 0 : index
    %17 = vector.load %arg3[%c0_5, %c0_6] : memref<8x128xf32, #tpu.memory_space<vmem>>, vector<8x128xf32>
    tpu.vector_store %arg3[%c0_5, %c0_6], %16 {strides = array<i32>} : memref<8x128xf32, #tpu.memory_space<vmem>>, vector<8x128xf32>,
    return
  }
  func.func @transform_0(%arg0: i32, %arg1: i32) -> (i32, i32) {
    %c0_i32 = arith.constant 0 : i32
    return %arg0, %arg1 : i32, i32
  }
  func.func @transform_1(%arg0: i32, %arg1: i32) -> (i32, i32) {
    %c0_i32 = arith.constant 0 : i32
    return %arg0, %arg1 : i32, i32
  }
}

</mosaic_0001>

<llo_original>
// kernel: apply.1
$region0: #{apply.1}
  #allocation0 [shape = 'u32[]', space=smem, size = 0x4, offset = 0x4, fixed_abs, tag = 'smem constant byte address 0x4 - core index']
  #allocation1 [shape = 'u32[72,128]{1,0:T(1,128)}', space=vmem, size = 0x9000, scoped, tag = 'internal scratch']
  %s0 = inlined_call_operand.vmem [shape: f32[16,128], index: 0, kind: input, shape index: {}]
  %s1 = inlined_call_operand.vmem [shape: f32[16,128], index: 1, kind: output, shape index: {}]
  %s2 = sld [smem:[#allocation0]]
  $region37: #{apply.1} parent=0
    _
  %s4 = ssub.s32 1, %s2
  %s5 = scalar_select 0, %s4, %s2
  loop: start=0, step=1, limit=4
  $region2: #{apply.1} parent=0 // loop_pre_header
    _
  $region3: #{apply.1} parent=0 // loop_header
    %s7 = sphi 0, %s11
    %p8 = scmp.ge.s32.totalorder %s7, 4
    %s14 = sphi 0, %s26
    %s15 = sphi 0, %s22
    %s16 = sphi 0, %s14
    %s17 = sphi 0, %s15
    %s18 = sphi 0, %s16
    %s19 = sphi 0, %s17
    %s31 = sphi 0, %s33
    %s34 = sphi 0, %s31
    %s35 = sphi 0, %s34
    %s51 = sphi 0, %s35
    %s59 = sphi 0, %s61
    %s62 = sphi 0, %s59
    %s63 = sphi 0, %s62
    %s79 = sphi 0, %s63
  $region4: #{apply.1} parent=0 // loop_header_branch
    %10 = sbr.rel (%p8) target = $region8
  $region5: #{apply.1} parent=0 // loop_body
    %s12 = ssub.s32 %s7, 1
    %s13 = ssub.s32 %s7, 2
    %s20 = sadd.s32 1, %s15
    %p21 = scmp.ge.s32.totalorder %s20, 1
    %s22 = scalar_select %p21, 0, %s20
    %s23 = sadd.s32 1, %s14
    %s24 = scalar_select %p21, %s23, %s14
    %p25 = scmp.ge.s32.totalorder %s24, 2
    %s26 = scalar_select %p25, 0, %s24
    %s27 = ssub.s32 %s14, %s26
    %s28 = ssub.s32 %s15, %s22
    %s29 = sor.u32 %s27, %s28
    %p30 = scmp.eq.s32.totalorder %s29, 0
    %s32 = sadd.s32 %s31, 1
    %s33 = scalar_select %p30, %s31, %s32
    %p36 = pneg %p30
    %p37 = scmp.eq.s32.totalorder %s7, 1
    %p38 = por %p36, %p37
    %p39 = scmp.ne.s32.totalorder %s31, %s34
    %p40 = scmp.eq.s32.totalorder %s7, 0
    %p41 = por %p39, %p40
    %p42 = scmp.ne.s32.totalorder %s31, %s34
    %p43 = scmp.eq.s32.totalorder %s12, 1
    %p44 = por %p42, %p43
    %p45 = scmp.ne.s32.totalorder %s34, %s35
    %p46 = scmp.eq.s32.totalorder %s12, 0
    %p47 = por %p45, %p46
    %p48 = scmp.ne.s32.totalorder %s34, %s35
    %p49 = scmp.eq.s32.totalorder %s13, 1
    %p50 = por %p48, %p49
    %p52 = scmp.ne.s32.totalorder %s35, %s51
    %p53 = scmp.eq.s32.totalorder %s13, 0
    %p54 = por %p52, %p53
    %s55 = ssub.s32 %s14, %s26
    %s56 = ssub.s32 %s15, %s22
    %s57 = sor.u32 %s55, %s56
    %p58 = scmp.eq.s32.totalorder %s57, 0
    %s60 = sadd.s32 %s59, 1
    %s61 = scalar_select %p58, %s59, %s60
    %p64 = pneg %p58
    %p65 = scmp.eq.s32.totalorder %s7, 1
    %p66 = por %p64, %p65
    %p67 = scmp.ne.s32.totalorder %s59, %s62
    %p68 = scmp.eq.s32.totalorder %s7, 0
    %p69 = por %p67, %p68
    %p70 = scmp.ne.s32.totalorder %s59, %s62
    %p71 = scmp.eq.s32.totalorder %s12, 1
    %p72 = por %p70, %p71
    %p73 = scmp.ne.s32.totalorder %s62, %s63
    %p74 = scmp.eq.s32.totalorder %s12, 0
    %p75 = por %p73, %p74
    %p76 = scmp.ne.s32.totalorder %s62, %s63
    %p77 = scmp.eq.s32.totalorder %s13, 1
    %p78 = por %p76, %p77
    %p80 = scmp.ne.s32.totalorder %s63, %s79
    %p81 = scmp.eq.s32.totalorder %s13, 0
    %p82 = por %p80, %p81
    %p83 = scmp.le.s32.totalorder 1, %s7
    %p84 = scmp.lt.s32.totalorder %s7, 3
    %p85 = pnand %p83, %p84
    %p86 = pneg %p85
    // Predicated region
    $region9: #{apply.1} parent=5 // pred_check
      _
    $region10: #{apply.1} parent=5 // pred_check_branch
      %88 = sbr.rel (%p85) target = $region12
    $region11: #{apply.1} parent=5 // pred_region
      %s89 = ssub.s32 %s7, 1
    $region12: #{apply.1} parent=5 // pred_fallthru
      _
    %p90 = scmp.lt.s32.totalorder %s7, 2
    // Predicated region
    $region13: #{apply.1} parent=5 // pred_check
      %p91 = pneg %p90
    $region14: #{apply.1} parent=5 // pred_check_branch
      %93 = sbr.rel (%p91) target = $region16
    $region15: #{apply.1} parent=5 // pred_region
      // Predicated region
      $region17: #{apply.1} parent=15 // pred_check
        %p94 = pneg %p41
      $region18: #{apply.1} parent=15 // pred_check_branch
        %96 = sbr.rel (%p94) target = $region20
      $region19: #{apply.1} parent=15 // pred_region
        %p97 = scmp.lt.s32.totalorder %s14, 1
        %s98 = scalar_select %p97, %s14, 1
        %p99 = scmp.lt.s32.totalorder %s15, 0
        %s100 = scalar_select %p99, %s15, 0
        %s101 = sadd.s32 %s100, %s98
        %s102 = smul.addr %s101, 8
        %s103 = scalar_lea.vmem %s0, %s102
      $region20: #{apply.1} parent=15 // pred_fallthru
        _
    $region16: #{apply.1} parent=5 // pred_fallthru
      _
    %p104 = scmp.le.s32.totalorder 1, %s7
    %p105 = scmp.lt.s32.totalorder %s7, 3
    %p106 = pnand %p104, %p105
    %p107 = pneg %p106
    // Predicated region
    $region21: #{apply.1} parent=5 // pred_check
      _
    $region22: #{apply.1} parent=5 // pred_check_branch
      %109 = sbr.rel (%p106) target = $region24
    $region23: #{apply.1} parent=5 // pred_region
      %s110 = ssub.s32 %s7, 1
      %p111 = scmp.lt.s32.totalorder %s16, 1
      %s112 = scalar_select %p111, %s16, 1
      %p113 = scmp.lt.s32.totalorder %s17, 0
      %s114 = scalar_select %p113, %s17, 0
      %s115 = sadd.s32 %s114, %s112
      %s116 = smul.addr %s115, 8
      %s117 = scalar_lea.vmem %s0, %s116
      %p118 = pneg %p47
      %p119 = pneg %p44
      %p120 = pneg %p75
      %p121 = pneg %p72
      %p122 = scmp.lt.s32.totalorder %s16, 1
      %s123 = scalar_select %p122, %s16, 1
      %p124 = scmp.lt.s32.totalorder %s17, 0
      %s125 = scalar_select %p124, %s17, 0
      %s126 = sadd.s32 %s125, %s123
      %s127 = smul.addr %s126, 8
      %s128 = scalar_lea.vmem %s1, %s127
      %p129 = scmp.lt.s32.totalorder %s16, 1
      %s130 = scalar_select %p129, %s16, 1
      %p131 = scmp.lt.s32.totalorder %s17, 0
      %s132 = scalar_select %p131, %s17, 0
      %s133 = sadd.s32 %s132, %s130
      %s134 = smul.addr %s133, 8
      %s135 = scalar_lea.vmem %s0, %s134
      %p136 = scmp.lt.s32.totalorder %s16, 1
      %s137 = scalar_select %p136, %s16, 1
      %p138 = scmp.lt.s32.totalorder %s17, 0
      %s139 = scalar_select %p138, %s17, 0
      %s140 = sadd.s32 %s139, %s137
      %s141 = smul.addr %s140, 8
      %s142 = scalar_lea.vmem %s1, %s141
      %v143 = vld [vmem:[%s135] sm:$0xff]
      %v144 = vmul.f32 %v143, %v143
      %v145 = vmul.f32 %v143, %v144
      %v146 = vmul.f32 %v145, 0.044715
      %v147 = vadd.f32 %v143, %v146
      %v148 = vmul.f32 %v147, 0.7978846
      %v149 = vtanh.pop %v148
      %v150 = vadd.f32 %v149, 1.0
      %v151 = vmul.f32 %v150, 0.5
      %v152 = vmul.f32 %v143, %v151
      %v153 = vmul.f32 %v152, 0.5
      %v154 = vadd.f32 %v143, %v153
      %155 = vst [vmem:[%s142] sm:$0xff] %v154
      %p156 = scmp.lt.s32.totalorder %s16, 1
      %s157 = scalar_select %p156, %s16, 1
      %p158 = scmp.lt.s32.totalorder %s17, 0
      %s159 = scalar_select %p158, %s17, 0
      %s160 = sadd.s32 %s159, %s157
      %s161 = smul.addr %s160, 8
      %s162 = scalar_lea.vmem %s1, %s161
      // Predicated region
      $region25: #{apply.1} parent=23 // pred_check
        %p163 = pneg %p72
      $region26: #{apply.1} parent=23 // pred_check_branch
        %165 = sbr.rel (%p163) target = $region28
      $region27: #{apply.1} parent=23 // pred_region
        _
      $region28: #{apply.1} parent=23 // pred_fallthru
        _
    $region24: #{apply.1} parent=5 // pred_fallthru
      _
    %p166 = scmp.le.s32.totalorder 2, %s7
    // Predicated region
    $region29: #{apply.1} parent=5 // pred_check
      %p167 = pneg %p166
    $region30: #{apply.1} parent=5 // pred_check_branch
      %169 = sbr.rel (%p167) target = $region32
    $region31: #{apply.1} parent=5 // pred_region
      %s170 = ssub.s32 %s7, 2
      // Predicated region
      $region33: #{apply.1} parent=31 // pred_check
        %p171 = pneg %p78
      $region34: #{apply.1} parent=31 // pred_check_branch
        %173 = sbr.rel (%p171) target = $region36
      $region35: #{apply.1} parent=31 // pred_region
        %p174 = scmp.lt.s32.totalorder %s18, 1
        %s175 = scalar_select %p174, %s18, 1
        %p176 = scmp.lt.s32.totalorder %s19, 0
        %s177 = scalar_select %p176, %s19, 0
        %s178 = sadd.s32 %s177, %s175
        %s179 = smul.addr %s178, 8
        %s180 = scalar_lea.vmem %s1, %s179
      $region36: #{apply.1} parent=31 // pred_fallthru
        _
    $region32: #{apply.1} parent=5 // pred_fallthru
      _
  $region6: #{apply.1} parent=0 // loop_footer
    %s11 = sadd.s32 1, %s7
  $region7: #{apply.1} parent=0 // loop_footer_branch
    %6 = sbr.rel target = $region3
  $region8: #{apply.1} parent=0 // loop_exit
    _

</llo_original>
